<compile_context>
chip_gen: v7x
topology: tpu7x:2x2x1
jax: 0.10.0
libtpu: 0.0.40
codegen_flags: <defaults>
</compile_context>

<pallas_src>
import functools

import jax
import jax.numpy as jnp
from jax.experimental import pallas as pl
from jax.experimental.pallas import tpu as pltpu


def _round_up(x, m):
    return (x + m - 1) // m * m


try:
    _VMEM_CAP = int(pltpu.get_tpu_info().vmem_capacity_bytes)
except Exception:  # conservative (v7x-sized) fallback
    _VMEM_CAP = 64 * 1024 * 1024


def _patch_embed_kernel(x_ref, w_ref, b_ref, o_ref):
    # x_ref: (tm, K) patch rows (streamed); w_ref: (K, N_pad) projection (resident);
    # b_ref: (1, N_pad) f32 bias (resident).  MXU matmul with f32 accumulation,
    # bias added in f32, single cast on the store.
    acc = jnp.dot(x_ref[...], w_ref[...], preferred_element_type=jnp.float32)
    o_ref[...] = (acc + b_ref[...]).astype(o_ref.dtype)


def _choose_tm(M, K, N_pad, in_bytes, out_bytes, budget_bytes):
    """Largest row tile whose (double-buffered) working set fits the VMEM budget,
    keeping >=2 tiles when M is large so both v7x TensorCores get work."""
    K_vmem = _round_up(K, 128)                 # lane padding inside VMEM
    m_cap = _round_up(M, 16)
    if M >= 512:
        m_cap = min(m_cap, _round_up((M + 1) // 2, 16))
    need = 0
    for tm in (2048, 1024, 512, 256, 128, 64, 32, 16):
        need = (2 * tm * K_vmem * in_bytes        # streamed rows (double-buffered)
                + 2 * tm * N_pad * out_bytes      # output tile (double-buffered)
                + 2 * K_vmem * N_pad * in_bytes   # resident weight (both buffers)
                + 2 * 8 * N_pad * 4)              # resident bias (sublane-padded)
        if tm <= m_cap and need <= budget_bytes:
            return tm, need
    return 16, need


@functools.partial(jax.jit,
                   static_argnames=("patch_size", "compute_dtype", "out_dtype"))
def patch_embed(x, weight, bias, patch_size, *, compute_dtype=jnp.bfloat16,
                out_dtype=None):
    """x: (B, C, H, W) NCHW (as PyTorch). weight: (embed_dim, C, P, P) like
    nn.Conv2d.weight. bias: (embed_dim,). Returns (B, num_patches, embed_dim)."""
    B, C, H, W = x.shape
    P = patch_size
    if H % P or W % P:
        raise ValueError(f"H={H}, W={W} must be divisible by patch_size={P}")
    embed_dim = weight.shape[0]
    nh, nw = H // P, W // P
    num_patches = nh * nw
    out_dtype = x.dtype if out_dtype is None else out_dtype

    # --- glue (fused under jit): cast first, then extract non-overlapping patches
    # in (C, ph, pw) order -> (B*num_patches, C*P*P) matching the reshaped weight.
    # TODO(synk): for very large images the transpose is still a separate HBM-bound
    # pass; fusing the patch gather into the kernel (pl.ANY + manual row-strip DMA)
    # only pays off at high M*K, so it stays in XLA here.
    xc = x.astype(compute_dtype)
    patches = xc.reshape(B, C, nh, P, nw, P)
    patches = patches.transpose(0, 2, 4, 1, 3, 5).reshape(B * num_patches, C * P * P)

    # conv weight (E, C, P, P) -> (K, N) so that dot == conv; bias kept f32.
    w2d = weight.reshape(embed_dim, C * P * P).T.astype(compute_dtype)
    b2d = bias.reshape(1, embed_dim).astype(jnp.float32)

    M, K = patches.shape
    N = embed_dim

    # Lane-dense output: pad only the tiny weight/bias along N.  The activation is
    # NOT padded (K block == full array dim; M handled via a partial last tile).
    N_pad = _round_up(N, 128)
    if N_pad != N:
        w2d = jnp.pad(w2d, ((0, 0), (0, N_pad - N)))
        b2d = jnp.pad(b2d, ((0, 0), (0, N_pad - N)))

    in_bytes = jnp.dtype(compute_dtype).itemsize
    out_bytes = jnp.dtype(out_dtype).itemsize
    budget = int(0.60 * _VMEM_CAP)            # ~38 MiB on v7x, ~77 MiB on v5e/v6e
    tm, vmem_need = _choose_tm(M, K, N_pad, in_bytes, out_bytes, budget)
    grid = (pl.cdiv(M, tm),)

    cost = pl.CostEstimate(
        flops=2 * grid[0] * tm * K * N_pad,
        transcendentals=0,
        bytes_accessed=(M * K * in_bytes + K * N_pad * in_bytes
                        + N_pad * 4 + M * N_pad * out_bytes),
    )
    vmem_limit = int(min(max(2 * vmem_need, 32 * 1024 * 1024),
                         int(0.75 * _VMEM_CAP)))

    out = pl.pallas_call(
        _patch_embed_kernel,
        out_shape=jax.ShapeDtypeStruct((M, N_pad), out_dtype),
        grid_spec=pltpu.PrefetchScalarGridSpec(
            num_scalar_prefetch=0,
            grid=grid,
            in_specs=[
                pl.BlockSpec((tm, K), lambda i: (i, 0)),       # streamed rows
                pl.BlockSpec((K, N_pad), lambda i: (0, 0)),    # resident weight
                pl.BlockSpec((1, N_pad), lambda i: (0, 0)),    # resident bias
            ],
            out_specs=pl.BlockSpec((tm, N_pad), lambda i: (i, 0)),
        ),
        compiler_params=pltpu.CompilerParams(
            dimension_semantics=("parallel",),   # megacore: shard row tiles
            vmem_limit_bytes=vmem_limit,
        ),
        cost_estimate=cost,
    )(patches, w2d, b2d)

    out = out[:, :N]                     # fuses under jit; no-op when N_pad == N
    return out.reshape(B, num_patches, embed_dim)


if __name__ == "__main__":
    # Small shapes consistent with PatchEmbed semantics:
    # img_size=16, patch_size=4, in_chans=4, embed_dim=32, batch=2
    B, C, H, W = 2, 4, 16, 16
    P = 4
    embed_dim = 32

    key = jax.random.PRNGKey(0)
    kx, kw, kb = jax.random.split(key, 3)
    x = jax.random.normal(kx, (B, C, H, W), dtype=jnp.float32)
    # same shapes as nn.Conv2d(C, embed_dim, kernel=P, stride=P) parameters
    weight = jax.random.normal(kw, (embed_dim, C, P, P), dtype=jnp.float32) * 0.02
    bias = jax.random.normal(kb, (embed_dim,), dtype=jnp.float32) * 0.02

    out = patch_embed(x, weight, bias, P)
    out = jax.block_until_ready(out)

    # reference: lax conv (same math as torch Conv2d NCHW), pure f32
    ref = jax.lax.conv_general_dilated(
        x, weight, window_strides=(P, P), padding="VALID",
        dimension_numbers=("NCHW", "OIHW", "NCHW"))
    ref = ref + bias.reshape(1, embed_dim, 1, 1)
    ref = ref.reshape(B, embed_dim, -1).transpose(0, 2, 1)

    assert out.shape == (B, (H // P) * (W // P), embed_dim)
    # bf16 MXU inputs + f32 accumulation -> slightly looser tolerance than pure f32
    assert jnp.allclose(out, ref, atol=1e-2, rtol=1e-2), (
        float(jnp.max(jnp.abs(out - ref))))

    print("KERNEL_OK")
</pallas_src>

<mosaic_0001>
module attributes {stable_mosaic.version = 11 : i64} {
  func.func @_patch_embed_kernel(%arg0: i32, %arg1: memref<32x64xbf16, #tpu.memory_space<vmem>>, %arg2: memref<64x128xbf16, #tpu.memory_space<vmem>>, %arg3: memref<1x128xf32, #tpu.memory_space<vmem>>, %arg4: memref<32x128xf32, #tpu.memory_space<vmem>>) attributes {dimension_semantics = [#tpu.dimension_semantics<parallel>], iteration_bounds = array<i64: 1>, scalar_prefetch = 0 : i64, scratch_operands = 0 : i64, tpu.core_type = #tpu.core_type<tc>, window_params = [{transform_indices = @transform_0, window_bounds = array<i64: 32, 64>}, {pipeline_mode = #tpu.pipeline_mode<synchronous>, transform_indices = @transform_1, window_bounds = array<i64: 64, 128>}, {pipeline_mode = #tpu.pipeline_mode<synchronous>, transform_indices = @transform_2, window_bounds = array<i64: 1, 128>}, {transform_indices = @transform_3, window_bounds = array<i64: 32, 128>}]} {
    %c0 = arith.constant 0 : index
    %c0_0 = arith.constant 0 : index
    %0 = vector.load %arg1[%c0, %c0_0] : memref<32x64xbf16, #tpu.memory_space<vmem>>, vector<32x64xbf16>
    %c0_1 = arith.constant 0 : index
    %c0_2 = arith.constant 0 : index
    %1 = vector.load %arg2[%c0_1, %c0_2] : memref<64x128xbf16, #tpu.memory_space<vmem>>, vector<64x128xbf16>
    %cst = arith.constant dense<0.000000e+00> : vector<32x128xf32>
    %2 = tpu.matmul %0, %1, %cst {dimension_numbers = #tpu.dot_dimension_numbers<[1], [0], [0], [1], [0, 0, 1, 1], [], []>} : vector<32x64xbf16>, vector<64x128xbf16>, vector<32x128xf32> -> vector<32x128xf32>
    %c0_3 = arith.constant 0 : index
    %c0_4 = arith.constant 0 : index
    %3 = vector.load %arg3[%c0_3, %c0_4] : memref<1x128xf32, #tpu.memory_space<vmem>>, vector<1x128xf32>
    %4 = vector.broadcast %3 : vector<1x128xf32> to vector<32x128xf32>
    %5 = arith.addf %2, %4 : vector<32x128xf32>
    %c0_5 = arith.constant 0 : index
    %c0_6 = arith.constant 0 : index
    %6 = vector.load %arg4[%c0_5, %c0_6] : memref<32x128xf32, #tpu.memory_space<vmem>>, vector<32x128xf32>
    tpu.vector_store %arg4[%c0_5, %c0_6], %5 {strides = array<i32>} : memref<32x128xf32, #tpu.memory_space<vmem>>, vector<32x128xf32>,
    return
  }
  func.func @transform_0(%arg0: i32) -> (i32, i32) {
    %c0_i32 = arith.constant 0 : i32
    %c0_i32_0 = arith.constant 0 : i32
    return %arg0, %c0_i32 : i32, i32
  }
  func.func @transform_1(%arg0: i32) -> (i32, i32) {
    %c0_i32 = arith.constant 0 : i32
    %c0_i32_0 = arith.constant 0 : i32
    %c0_i32_1 = arith.constant 0 : i32
    return %c0_i32, %c0_i32_0 : i32, i32
  }
  func.func @transform_2(%arg0: i32) -> (i32, i32) {
    %c0_i32 = arith.constant 0 : i32
    %c0_i32_0 = arith.constant 0 : i32
    %c0_i32_1 = arith.constant 0 : i32
    return %c0_i32, %c0_i32_0 : i32, i32
  }
  func.func @transform_3(%arg0: i32) -> (i32, i32) {
    %c0_i32 = arith.constant 0 : i32
    %c0_i32_0 = arith.constant 0 : i32
    return %arg0, %c0_i32 : i32, i32
  }
}

</mosaic_0001>

<llo_original>
// kernel: patch_embed.1
$region0: #{patch_embed.1}
  #allocation0 [shape = 'u32[]', space=smem, size = 0x4, offset = 0x4, fixed_abs, tag = 'smem constant byte address 0x4 - core index']
  #allocation1 [shape = 'u32[144,128]{1,0:T(1,128)}', space=vmem, size = 0x12000, scoped, tag = 'internal scratch']
  %s0 = inlined_call_operand.vmem [shape: bf16[32,64], index: 0, kind: input, shape index: {}]
  %s1 = inlined_call_operand.vmem [shape: bf16[64,128], index: 1, kind: input, shape index: {}]
  %s2 = inlined_call_operand.vmem [shape: f32[1,128], index: 2, kind: input, shape index: {}]
  %s3 = inlined_call_operand.hbm [shape: f32[32,128], index: 3, kind: output, shape index: {}]
  %s4 = sld [smem:[#allocation0]]
  $region22: #{patch_embed.1} parent=0
    _
  %s6 = ssub.s32 1, %s4
  %s7 = scalar_select 0, %s6, %s4
  $region1: #{patch_embed.1} parent=0
    #allocation2 [shape = 'u8[16384]{0}', space=vmem, size = 0x4000, scoped, tag = 'output window, operand 0, single buffered']
    #allocation3 [shape = 's32[1]{0}', space=sflag, size = 0x4, scoped, tag = 'scoped memory for patch_embed.1']
    %8 = vsyncpa [#allocation3], 0
    // Predicated region
    $region2: #{patch_embed.1} parent=1 // pred_check
      _
    $region3: #{patch_embed.1} parent=1 // pred_check_branch
      %10 = sbr.rel (0) target = $region5
    $region4: #{patch_embed.1} parent=1 // pred_region
      _
    $region5: #{patch_embed.1} parent=1 // pred_fallthru
      _
    // Predicated region
    $region6: #{patch_embed.1} parent=1 // pred_check
      _
    $region7: #{patch_embed.1} parent=1 // pred_check_branch
      %12 = sbr.rel (0) target = $region9
    $region8: #{patch_embed.1} parent=1 // pred_region
      _
    $region9: #{patch_embed.1} parent=1 // pred_fallthru
      _
    // Predicated region
    $region10: #{patch_embed.1} parent=1 // pred_check
      _
    $region11: #{patch_embed.1} parent=1 // pred_check_branch
      %14 = sbr.rel (0) target = $region13
    $region12: #{patch_embed.1} parent=1 // pred_region
      _
    $region13: #{patch_embed.1} parent=1 // pred_fallthru
      _
    %v16 = vld [vmem:[%s0] sm:$0xf]
    %v17 = vld [vmem:[%s0 + $0x4] sm:$0xf]
    %v18 = vld [vmem:[%s0 + $0x8] sm:$0xf]
    %v19 = vld [vmem:[%s0 + $0xc] sm:$0xf]
    %v20 = vld [vmem:[%s1] sm:$0xf]
    %v21 = vld [vmem:[%s1 + $0x4] sm:$0xf]
    %v22 = vld [vmem:[%s1 + $0x8] sm:$0xf]
    %v23 = vld [vmem:[%s1 + $0xc] sm:$0xf]
    %v24 = vld [vmem:[%s1 + $0x10] sm:$0xf]
    %v25 = vld [vmem:[%s1 + $0x14] sm:$0xf]
    %v26 = vld [vmem:[%s1 + $0x18] sm:$0xf]
    %v27 = vld [vmem:[%s1 + $0x1c] sm:$0xf]
    %v28 = vld [vmem:[%s2] sm:$0x1]
    %v30 = vlaneseq
    %v31 = vshrl.u32 %v30, 7
    %v32 = vsub.s32 0, %v31
    %v33 = vrot.slane %v28, %v32
    %v39 = vunpack.c.l.b16 %v16
    %v40 = vunpack.c.l.b16 %v17
    %v41 = vunpack.c.l.b16 %v18
    %v42 = vunpack.c.l.b16 %v19
    %v43 = vpack.c.b16 %v40, %v39
    %v44 = vpack.c.b16 %v42, %v41
    %v53 = vunpack.c.l.b16 %v20
    %v54 = vunpack.c.l.b16 %v21
    %v55 = vunpack.c.l.b16 %v22
    %v56 = vunpack.c.l.b16 %v23
    %v57 = vunpack.c.l.b16 %v24
    %v58 = vunpack.c.l.b16 %v25
    %v59 = vunpack.c.l.b16 %v26
    %v60 = vunpack.c.l.b16 %v27
    %v61 = vpack.c.b16 %v54, %v53
    %v62 = vpack.c.b16 %v56, %v55
    %v63 = vpack.c.b16 %v58, %v57
    %v64 = vpack.c.b16 %v60, %v59
    %vm69 = vcmask 523264
    %v71 = vsel %vm69, %v43, 0
    %v74 = vsel %vm69, %v44, 0
    %76 = vmatprep.subr.bf16.mxu0 0
    %77 = vmatpush1.bf16.msra.mxu0 %v61
    %78 = vmatprep.subr.bf16.mxu0 0
    %79 = vmatpush1.bf16.msra.mxu0 %v62
    %80 = vmatprep.subr.bf16.mxu0 0
    %81 = vmatpush1.bf16.msra.mxu0 %v63
    %82 = vmatprep.subr.bf16.mxu0 0
    %83 = vmatpush1.bf16.msra.mxu0 %v64
    %84 = vmatprep.subr.bf16.mxu0 0
    %85 = vmatpush1.bf16.msra.mxu0 0
    %86 = vmatprep.subr.bf16.mxu0 0
    %87 = vmatpush1.bf16.msra.mxu0 0
    %88 = vmatprep.subr.bf16.mxu0 0
    %89 = vmatpush1.bf16.msra.mxu0 0
    %90 = vmatprep.subr.bf16.mxu0 0
    %91 = vmatpush1.bf16.msra.mxu0 0
    %92 = vmatprep.subr.bf16.mxu0 0
    %93 = vmatpush1.bf16.msra.mxu0 0
    %94 = vmatprep.subr.bf16.mxu0 0
    %95 = vmatpush1.bf16.msra.mxu0 0
    %96 = vmatprep.subr.bf16.mxu0 0
    %97 = vmatpush1.bf16.msra.mxu0 0
    %98 = vmatprep.subr.bf16.mxu0 0
    %99 = vmatpush1.bf16.msra.mxu0 0
    %100 = vmatprep.subr.bf16.mxu0 0
    %101 = vmatpush1.bf16.msra.mxu0 0
    %102 = vmatprep.subr.bf16.mxu0 0
    %103 = vmatpush1.bf16.msra.mxu0 0
    %104 = vmatprep.subr.bf16.mxu0 0
    %105 = vmatpush1.bf16.msra.mxu0 0
    %106 = vmatprep.subr.bf16.mxu0 0
    %107 = vmatpush1.bf16.msra.mxu0 0
    %108 = vmatprep.mubr.bf16.mxu0 0
    %109 = vmatmul.mubr.bf16.gmra.mrb[0].mxu0 %v71
    %v110 = vpop.f32.mrb[0].mxu0
    %v111 = vadd.f32 %v33, %v110
    %v112 = vpop.f32.mrb[0].mxu0
    %v113 = vpop.f32.mrb[0].mxu0
    %v114 = vadd.f32 %v33, %v113
    %v115 = vpop.f32.mrb[0].mxu0
    %116 = vmatprep.mubr.bf16.mxu0 0
    %117 = vmatmul.mubr.bf16.gmra.mrb[0].mxu0 %v74
    %v118 = vpop.f32.mrb[0].mxu0
    %v119 = vadd.f32 %v33, %v118
    %v120 = vpop.f32.mrb[0].mxu0
    %v121 = vpop.f32.mrb[0].mxu0
    %v122 = vadd.f32 %v33, %v121
    %v123 = vpop.f32.mrb[0].mxu0
    %124 = vdwg.mxu0
    %125 = vst [vmem:[#allocation2] sm:$0xff] %v111
    %126 = vst [vmem:[#allocation2 + $0x8] sm:$0xff] %v114
    %127 = vst [vmem:[#allocation2 + $0x10] sm:$0xff] %v119
    %128 = vst [vmem:[#allocation2 + $0x18] sm:$0xff] %v122
    // Predicated region
    $region14: #{patch_embed.1} parent=1 // pred_check
      _
    $region15: #{patch_embed.1} parent=1 // pred_check_branch
      %130 = sbr.rel (0) target = $region17
    $region16: #{patch_embed.1} parent=1 // pred_region
      %s132 = ssub.s32 512, 512
      %133 = vsyncadd [#allocation3], %s132
      %s134 = sshll.u32 [#allocation2], 4
      %s135 = int_to_ptr.vmem [resolvable:$true] %s134
      %140 = dma.vmem_to_hbm [thread:$0]  %s135, 512, %s3, [#allocation3], 128, 128, 8
    $region17: #{patch_embed.1} parent=1 // pred_fallthru
      _
    // Predicated region
    $region18: #{patch_embed.1} parent=1 // pred_check
      _
    $region19: #{patch_embed.1} parent=1 // pred_check_branch
      %142 = sbr.rel (0) target = $region21
    $region20: #{patch_embed.1} parent=1 // pred_region
      %143 = dma.done [#allocation3], 512
    $region21: #{patch_embed.1} parent=1 // pred_fallthru
      _
    %144 = vsyncpa [#allocation3], 1

</llo_original>
